<compile_context>
chip_gen: v7x
topology: tpu7x:2x2x1
jax: 0.10.0
libtpu: 0.0.40
codegen_flags: <defaults>
</compile_context>

<pallas_src>
import math
import functools

import jax
import jax.numpy as jnp
from jax import lax
from jax.experimental import pallas as pl
from jax.experimental.pallas import tpu as pltpu


def _flash_self_attn_kernel(xq_ref, xk_ref, wq_ref, wkv_ref, bq_ref, bkv_ref,
                            o_ref, q_sc, m_sc, l_sc, acc_sc, *, d_pad):
    ki = pl.program_id(2)

    @pl.when(ki == 0)
    def _():
        # Q projection for this query tile. The 1/sqrt(d_out) scale is already
        # folded into wq/bq (wrapper-side), so no per-score multiply is needed.
        q_sc[...] = (jnp.dot(xq_ref[0], wq_ref[...],
                             preferred_element_type=jnp.float32)
                     + bq_ref[...])
        m_sc[...] = jnp.full(m_sc.shape, -jnp.inf, m_sc.dtype)
        l_sc[...] = jnp.zeros_like(l_sc)
        acc_sc[...] = jnp.zeros_like(acc_sc)

    # Fused K/V projection for this KV tile: one wide MXU matmul (tk, 2*d_pad).
    kv = (jnp.dot(xk_ref[0], wkv_ref[...], preferred_element_type=jnp.float32)
          + bkv_ref[...])
    k = kv[:, :d_pad]          # 128-aligned static slices -> no VMEM reshuffle
    v = kv[:, d_pad:]

    # Scores: contract feature dims of q and k directly (no explicit transpose).
    s = lax.dot_general(q_sc[...], k, (((1,), (1,)), ((), ())),
                        preferred_element_type=jnp.float32)      # (tq, tk)

    # Online softmax update (flash-attention style).
    m_prev = m_sc[...]
    m_new = jnp.maximum(m_prev, jnp.max(s, axis=-1, keepdims=True))
    alpha = jnp.exp(m_prev - m_new)
    e = jnp.exp(s - m_new)
    l_sc[...] = alpha * l_sc[...] + jnp.sum(e, axis=-1, keepdims=True)
    acc_sc[...] = alpha * acc_sc[...] + jnp.dot(
        e, v, preferred_element_type=jnp.float32)
    m_sc[...] = m_new

    @pl.when(ki == pl.num_programs(2) - 1)
    def _():
        # Deferred normalization: one reciprocal on the (tq, 1) denominator.
        inv = pl.reciprocal(l_sc[...], approx=False)
        o_ref[0] = (acc_sc[...] * inv).astype(o_ref.dtype)


def _choose_tile(n, cap):
    """Largest tile that divides n, is <= cap and keeps TPU-friendly alignment."""
    if n <= cap:
        return n
    for t in range(cap, 7, -1):
        if n % t == 0 and t % 8 == 0:
            return t
    return n  # fallback: single full-length tile


def self_attention_head(x, wq, wk, wv, bq, bk, bv, *, tq_cap=256, tk_cap=512):
    """x: (bs, N, d_in); weights (d_out, d_in); biases (d_out,). Returns (bs, N, d_out)."""
    bs, N, d_in = x.shape
    d_out = wq.shape[0]
    scale = 1.0 / math.sqrt(d_out)

    # Pad the head dim up to a multiple of 128 so outputs/intermediates are lane-dense.
    d_pad = ((d_out + 127) // 128) * 128
    pad = d_pad - d_out

    def prep_w(w):  # (d_out, d_in) -> pre-transposed, zero-padded (d_in, d_pad)
        wt = jnp.swapaxes(w, 0, 1)
        if pad:
            wt = jnp.pad(wt, ((0, 0), (0, pad)))
        return wt.astype(x.dtype)

    def prep_b(b):  # (d_out,) -> (1, d_pad)
        if pad:
            b = jnp.pad(b, (0, pad))
        return b.reshape(1, d_pad).astype(jnp.float32)

    # Fold the attention scale into the Q projection (wrapper-side, free in-kernel).
    wq_t = prep_w(wq * scale)
    bq_p = prep_b(bq * scale)
    # Fuse K and V projections into one weight/bias.
    wkv_t = jnp.concatenate([prep_w(wk), prep_w(wv)], axis=-1)   # (d_in, 2*d_pad)
    bkv_p = jnp.concatenate([prep_b(bk), prep_b(bv)], axis=-1)   # (1, 2*d_pad)

    tq = _choose_tile(N, tq_cap)
    tk = _choose_tile(N, tk_cap)
    n_q = N // tq
    n_k = N // tk

    kernel = functools.partial(_flash_self_attn_kernel, d_pad=d_pad)

    out_padded = pl.pallas_call(
        kernel,
        out_shape=jax.ShapeDtypeStruct((bs, N, d_pad), x.dtype),
        grid_spec=pltpu.PrefetchScalarGridSpec(
            num_scalar_prefetch=0,
            grid=(bs, n_q, n_k),
            in_specs=[
                pl.BlockSpec((1, tq, d_in), lambda b, qi, ki: (b, qi, 0)),     # x (query tile)
                pl.BlockSpec((1, tk, d_in), lambda b, qi, ki: (b, ki, 0)),     # x (kv tile)
                pl.BlockSpec((d_in, d_pad), lambda b, qi, ki: (0, 0)),         # Wq (scaled, transposed)
                pl.BlockSpec((d_in, 2 * d_pad), lambda b, qi, ki: (0, 0)),     # fused W_kv
                pl.BlockSpec((1, d_pad), lambda b, qi, ki: (0, 0)),            # bq (scaled)
                pl.BlockSpec((1, 2 * d_pad), lambda b, qi, ki: (0, 0)),        # fused b_kv
            ],
            out_specs=pl.BlockSpec((1, tq, d_pad), lambda b, qi, ki: (b, qi, 0)),
            scratch_shapes=[
                pltpu.VMEM((tq, d_pad), jnp.float32),   # q tile
                pltpu.VMEM((tq, 1), jnp.float32),       # running max m
                pltpu.VMEM((tq, 1), jnp.float32),       # running denom l
                pltpu.VMEM((tq, d_pad), jnp.float32),   # output accumulator
            ],
        ),
        compiler_params=pltpu.CompilerParams(
            # KV axis is the reduction (last, "arbitrary"); batch/query tiles parallel.
            dimension_semantics=("parallel", "parallel", "arbitrary"),
            # Raise the default scoped VMEM limit (16/32 MiB) but stay within
            # v7x's 64 MiB physical budget.
            vmem_limit_bytes=48 * 1024 * 1024,
        ),
    )(x, x, wq_t, wkv_t, bq_p, bkv_p)

    # Strip the lane padding (layout plumbing only).
    return out_padded[..., :d_out]


def _reference(x, wq, wk, wv, bq, bk, bv):
    q = x @ wq.T + bq
    k = x @ wk.T + bk
    v = x @ wv.T + bv
    d = k.shape[-1]
    s = q @ jnp.swapaxes(k, -1, -2) / jnp.sqrt(jnp.float32(d))
    p = jax.nn.softmax(s, axis=-1)
    return p @ v


if __name__ == "__main__":
    key = jax.random.PRNGKey(0)
    bs, N, d_in, d_out = 2, 8, 16, 32

    kx, kq, kk, kv, kbq, kbk, kbv = jax.random.split(key, 7)
    x = jax.random.normal(kx, (bs, N, d_in), dtype=jnp.float32)

    # Deterministic parameter init (mimicking nn.Linear's uniform bound).
    bound = 1.0 / math.sqrt(d_in)
    wq = jax.random.uniform(kq, (d_out, d_in), jnp.float32, -bound, bound)
    wk = jax.random.uniform(kk, (d_out, d_in), jnp.float32, -bound, bound)
    wv = jax.random.uniform(kv, (d_out, d_in), jnp.float32, -bound, bound)
    bq = jax.random.uniform(kbq, (d_out,), jnp.float32, -bound, bound)
    bk = jax.random.uniform(kbk, (d_out,), jnp.float32, -bound, bound)
    bv = jax.random.uniform(kbv, (d_out,), jnp.float32, -bound, bound)

    out = self_attention_head(x, wq, wk, wv, bq, bk, bv)
    out = jax.block_until_ready(out)

    ref = _reference(x, wq, wk, wv, bq, bk, bv)
    assert out.shape == (bs, N, d_out)
    assert jnp.allclose(out, ref, atol=1e-5, rtol=1e-5), "mismatch vs reference"

    print("KERNEL_OK")
</pallas_src>

<mosaic_0001>
module attributes {stable_mosaic.version = 11 : i64} {
  func.func @_flash_self_attn_kernel(%arg0: i32, %arg1: i32, %arg2: i32, %arg3: memref<1x8x16xf32, #tpu.memory_space<vmem>>, %arg4: memref<1x8x16xf32, #tpu.memory_space<vmem>>, %arg5: memref<16x128xf32, #tpu.memory_space<vmem>>, %arg6: memref<16x256xf32, #tpu.memory_space<vmem>>, %arg7: memref<1x128xf32, #tpu.memory_space<vmem>>, %arg8: memref<1x256xf32, #tpu.memory_space<vmem>>, %arg9: memref<1x8x128xf32, #tpu.memory_space<vmem>>, %arg10: memref<8x128xf32, #tpu.memory_space<vmem>>, %arg11: memref<8x1xf32, #tpu.memory_space<vmem>>, %arg12: memref<8x1xf32, #tpu.memory_space<vmem>>, %arg13: memref<8x128xf32, #tpu.memory_space<vmem>>) attributes {dimension_semantics = [#tpu.dimension_semantics<parallel>, #tpu.dimension_semantics<parallel>, #tpu.dimension_semantics<arbitrary>], iteration_bounds = array<i64: 2, 1, 1>, scalar_prefetch = 0 : i64, scratch_operands = 4 : i64, tpu.core_type = #tpu.core_type<tc>, window_params = [{transform_indices = @transform_0, window_bounds = array<i64: 1, 8, 16>}, {transform_indices = @transform_1, window_bounds = array<i64: 1, 8, 16>}, {pipeline_mode = #tpu.pipeline_mode<synchronous>, transform_indices = @transform_2, window_bounds = array<i64: 16, 128>}, {pipeline_mode = #tpu.pipeline_mode<synchronous>, transform_indices = @transform_3, window_bounds = array<i64: 16, 256>}, {pipeline_mode = #tpu.pipeline_mode<synchronous>, transform_indices = @transform_4, window_bounds = array<i64: 1, 128>}, {pipeline_mode = #tpu.pipeline_mode<synchronous>, transform_indices = @transform_5, window_bounds = array<i64: 1, 256>}, {transform_indices = @transform_6, window_bounds = array<i64: 1, 8, 128>}]} {
    %c0_i32 = arith.constant 0 : i32
    %0 = arith.cmpi eq, %arg2, %c0_i32 : i32
    %1 = arith.extui %0 : i1 to i32
    %c0_i32_0 = arith.constant 0 : i32
    %2 = arith.cmpi ne, %1, %c0_i32_0 : i32
    scf.if %2 {
      %c0_27 = arith.constant 0 : index
      %c0_28 = arith.constant 0 : index
      %c0_29 = arith.constant 0 : index
      %39 = vector.load %arg3[%c0_27, %c0_28, %c0_29] : memref<1x8x16xf32, #tpu.memory_space<vmem>>, vector<1x8x16xf32>
      %40 = vector.shape_cast %39 : vector<1x8x16xf32> to vector<8x16xf32>
      %c0_30 = arith.constant 0 : index
      %c0_31 = arith.constant 0 : index
      %41 = vector.load %arg5[%c0_30, %c0_31] : memref<16x128xf32, #tpu.memory_space<vmem>>, vector<16x128xf32>
      %cst_32 = arith.constant dense<0.000000e+00> : vector<8x128xf32>
      %42 = tpu.matmul %40, %41, %cst_32 {dimension_numbers = #tpu.dot_dimension_numbers<[1], [0], [0], [1], [0, 0, 1, 1], [], []>} : vector<8x16xf32>, vector<16x128xf32>, vector<8x128xf32> -> vector<8x128xf32>
      %c0_33 = arith.constant 0 : index
      %c0_34 = arith.constant 0 : index
      %43 = vector.load %arg7[%c0_33, %c0_34] : memref<1x128xf32, #tpu.memory_space<vmem>>, vector<1x128xf32>
      %44 = vector.broadcast %43 : vector<1x128xf32> to vector<8x128xf32>
      %45 = arith.addf %42, %44 : vector<8x128xf32>
      %c0_35 = arith.constant 0 : index
      %c0_36 = arith.constant 0 : index
      %46 = vector.load %arg10[%c0_35, %c0_36] : memref<8x128xf32, #tpu.memory_space<vmem>>, vector<8x128xf32>
      tpu.vector_store %arg10[%c0_35, %c0_36], %45 {strides = array<i32>} : memref<8x128xf32, #tpu.memory_space<vmem>>, vector<8x128xf32>,
      %cst_37 = arith.constant 0xFF800000 : f32
      %47 = vector.broadcast %cst_37 : f32 to vector<8x1xf32>
      %c0_38 = arith.constant 0 : index
      %c0_39 = arith.constant 0 : index
      %48 = vector.load %arg11[%c0_38, %c0_39] : memref<8x1xf32, #tpu.memory_space<vmem>>, vector<8x1xf32>
      tpu.vector_store %arg11[%c0_38, %c0_39], %47 {strides = array<i32>} : memref<8x1xf32, #tpu.memory_space<vmem>>, vector<8x1xf32>,
      %cst_40 = arith.constant 0.000000e+00 : f32
      %49 = vector.broadcast %cst_40 : f32 to vector<8x1xf32>
      %c0_41 = arith.constant 0 : index
      %c0_42 = arith.constant 0 : index
      %50 = vector.load %arg12[%c0_41, %c0_42] : memref<8x1xf32, #tpu.memory_space<vmem>>, vector<8x1xf32>
      tpu.vector_store %arg12[%c0_41, %c0_42], %49 {strides = array<i32>} : memref<8x1xf32, #tpu.memory_space<vmem>>, vector<8x1xf32>,
      %cst_43 = arith.constant 0.000000e+00 : f32
      %51 = vector.broadcast %cst_43 : f32 to vector<8x128xf32>
      %c0_44 = arith.constant 0 : index
      %c0_45 = arith.constant 0 : index
      %52 = vector.load %arg13[%c0_44, %c0_45] : memref<8x128xf32, #tpu.memory_space<vmem>>, vector<8x128xf32>
      tpu.vector_store %arg13[%c0_44, %c0_45], %51 {strides = array<i32>} : memref<8x128xf32, #tpu.memory_space<vmem>>, vector<8x128xf32>,
    } else {
    }
    %c0 = arith.constant 0 : index
    %c0_1 = arith.constant 0 : index
    %c0_2 = arith.constant 0 : index
    %3 = vector.load %arg4[%c0, %c0_1, %c0_2] : memref<1x8x16xf32, #tpu.memory_space<vmem>>, vector<1x8x16xf32>
    %4 = vector.shape_cast %3 : vector<1x8x16xf32> to vector<8x16xf32>
    %c0_3 = arith.constant 0 : index
    %c0_4 = arith.constant 0 : index
    %5 = vector.load %arg6[%c0_3, %c0_4] : memref<16x256xf32, #tpu.memory_space<vmem>>, vector<16x256xf32>
    %cst = arith.constant dense<0.000000e+00> : vector<8x256xf32>
    %6 = tpu.matmul %4, %5, %cst {dimension_numbers = #tpu.dot_dimension_numbers<[1], [0], [0], [1], [0, 0, 1, 1], [], []>} : vector<8x16xf32>, vector<16x256xf32>, vector<8x256xf32> -> vector<8x256xf32>
    %c0_5 = arith.constant 0 : index
    %c0_6 = arith.constant 0 : index
    %7 = vector.load %arg8[%c0_5, %c0_6] : memref<1x256xf32, #tpu.memory_space<vmem>>, vector<1x256xf32>
    %8 = vector.broadcast %7 : vector<1x256xf32> to vector<8x256xf32>
    %9 = arith.addf %6, %8 : vector<8x256xf32>
    %10 = vector.extract_strided_slice %9 {offsets = [0, 0], sizes = [8, 128], strides = [1, 1]} : vector<8x256xf32> to vector<8x128xf32>
    %11 = vector.extract_strided_slice %9 {offsets = [0, 128], sizes = [8, 128], strides = [1, 1]} : vector<8x256xf32> to vector<8x128xf32>
    %c0_7 = arith.constant 0 : index
    %c0_8 = arith.constant 0 : index
    %12 = vector.load %arg10[%c0_7, %c0_8] : memref<8x128xf32, #tpu.memory_space<vmem>>, vector<8x128xf32>
    %cst_9 = arith.constant dense<0.000000e+00> : vector<8x8xf32>
    %13 = tpu.matmul %12, %10, %cst_9 {dimension_numbers = #tpu.dot_dimension_numbers<[1], [1], [0], [0], [0, 0, 1, 0], [], []>} : vector<8x128xf32>, vector<8x128xf32>, vector<8x8xf32> -> vector<8x8xf32>
    %c0_10 = arith.constant 0 : index
    %c0_11 = arith.constant 0 : index
    %14 = vector.load %arg11[%c0_10, %c0_11] : memref<8x1xf32, #tpu.memory_space<vmem>>, vector<8x1xf32>
    %cst_12 = arith.constant dense<0xFF800000> : vector<8xf32>
    %15 = vector.multi_reduction <maximumf>, %13, %cst_12 [1] : vector<8x8xf32> to vector<8xf32>
    %16 = vector.shape_cast %15 : vector<8xf32> to vector<8x1xf32>
    %17 = arith.maximumf %14, %16 : vector<8x1xf32>
    %18 = arith.subf %14, %17 : vector<8x1xf32>
    %19 = math.exp %18 : vector<8x1xf32>
    %20 = vector.broadcast %17 : vector<8x1xf32> to vector<8x8xf32>
    %21 = arith.subf %13, %20 : vector<8x8xf32>
    %22 = math.exp %21 : vector<8x8xf32>
    %c0_13 = arith.constant 0 : index
    %c0_14 = arith.constant 0 : index
    %23 = vector.load %arg12[%c0_13, %c0_14] : memref<8x1xf32, #tpu.memory_space<vmem>>, vector<8x1xf32>
    %24 = arith.mulf %19, %23 : vector<8x1xf32>
    %cst_15 = arith.constant dense<0.000000e+00> : vector<8xf32>
    %25 = vector.multi_reduction <add>, %22, %cst_15 [1] : vector<8x8xf32> to vector<8xf32>
    %26 = vector.shape_cast %25 : vector<8xf32> to vector<8x1xf32>
    %27 = arith.addf %24, %26 : vector<8x1xf32>
    %c0_16 = arith.constant 0 : index
    %c0_17 = arith.constant 0 : index
    %28 = vector.load %arg12[%c0_16, %c0_17] : memref<8x1xf32, #tpu.memory_space<vmem>>, vector<8x1xf32>
    tpu.vector_store %arg12[%c0_16, %c0_17], %27 {strides = array<i32>} : memref<8x1xf32, #tpu.memory_space<vmem>>, vector<8x1xf32>,
    %c0_18 = arith.constant 0 : index
    %c0_19 = arith.constant 0 : index
    %29 = vector.load %arg13[%c0_18, %c0_19] : memref<8x128xf32, #tpu.memory_space<vmem>>, vector<8x128xf32>
    %30 = vector.broadcast %19 : vector<8x1xf32> to vector<8x128xf32>
    %31 = arith.mulf %30, %29 : vector<8x128xf32>
    %cst_20 = arith.constant dense<0.000000e+00> : vector<8x128xf32>
    %32 = tpu.matmul %22, %11, %cst_20 {dimension_numbers = #tpu.dot_dimension_numbers<[1], [0], [0], [1], [0, 0, 1, 1], [], []>} : vector<8x8xf32>, vector<8x128xf32>, vector<8x128xf32> -> vector<8x128xf32>
    %33 = arith.addf %31, %32 : vector<8x128xf32>
    %c0_21 = arith.constant 0 : index
    %c0_22 = arith.constant 0 : index
    %34 = vector.load %arg13[%c0_21, %c0_22] : memref<8x128xf32, #tpu.memory_space<vmem>>, vector<8x128xf32>
    tpu.vector_store %arg13[%c0_21, %c0_22], %33 {strides = array<i32>} : memref<8x128xf32, #tpu.memory_space<vmem>>, vector<8x128xf32>,
    %c0_23 = arith.constant 0 : index
    %c0_24 = arith.constant 0 : index
    %35 = vector.load %arg11[%c0_23, %c0_24] : memref<8x1xf32, #tpu.memory_space<vmem>>, vector<8x1xf32>
    tpu.vector_store %arg11[%c0_23, %c0_24], %17 {strides = array<i32>} : memref<8x1xf32, #tpu.memory_space<vmem>>, vector<8x1xf32>,
    %c0_i32_25 = arith.constant 0 : i32
    %36 = arith.cmpi eq, %arg2, %c0_i32_25 : i32
    %37 = arith.extui %36 : i1 to i32
    %c0_i32_26 = arith.constant 0 : i32
    %38 = arith.cmpi ne, %37, %c0_i32_26 : i32
    scf.if %38 {
      %c0_27 = arith.constant 0 : index
      %c0_28 = arith.constant 0 : index
      %39 = vector.load %arg12[%c0_27, %c0_28] : memref<8x1xf32, #tpu.memory_space<vmem>>, vector<8x1xf32>
      %40 = tpu.reciprocal %39 : vector<8x1xf32> -> vector<8x1xf32>
      %c0_29 = arith.constant 0 : index
      %c0_30 = arith.constant 0 : index
      %41 = vector.load %arg13[%c0_29, %c0_30] : memref<8x128xf32, #tpu.memory_space<vmem>>, vector<8x128xf32>
      %42 = vector.broadcast %40 : vector<8x1xf32> to vector<8x128xf32>
      %43 = arith.mulf %41, %42 : vector<8x128xf32>
      %c0_31 = arith.constant 0 : index
      %c0_32 = arith.constant 0 : index
      %c0_33 = arith.constant 0 : index
      %44 = vector.load %arg9[%c0_31, %c0_32, %c0_33] : memref<1x8x128xf32, #tpu.memory_space<vmem>>, vector<1x8x128xf32>
      %45 = vector.shape_cast %44 : vector<1x8x128xf32> to vector<8x128xf32>
      %46 = vector.shape_cast %43 : vector<8x128xf32> to vector<1x8x128xf32>
      tpu.vector_store %arg9[%c0_31, %c0_32, %c0_33], %46 {strides = array<i32>} : memref<1x8x128xf32, #tpu.memory_space<vmem>>, vector<1x8x128xf32>,
    } else {
    }
    return
  }
  func.func @transform_0(%arg0: i32, %arg1: i32, %arg2: i32) -> (i32, i32, i32) {
    %c0_i32 = arith.constant 0 : i32
    %c0_i32_0 = arith.constant 0 : i32
    return %arg0, %arg1, %c0_i32 : i32, i32, i32
  }
  func.func @transform_1(%arg0: i32, %arg1: i32, %arg2: i32) -> (i32, i32, i32) {
    %c0_i32 = arith.constant 0 : i32
    %c0_i32_0 = arith.constant 0 : i32
    return %arg0, %arg2, %c0_i32 : i32, i32, i32
  }
  func.func @transform_2(%arg0: i32, %arg1: i32, %arg2: i32) -> (i32, i32) {
    %c0_i32 = arith.constant 0 : i32
    %c0_i32_0 = arith.constant 0 : i32
    %c0_i32_1 = arith.constant 0 : i32
    return %c0_i32, %c0_i32_0 : i32, i32
  }
  func.func @transform_3(%arg0: i32, %arg1: i32, %arg2: i32) -> (i32, i32) {
    %c0_i32 = arith.constant 0 : i32
    %c0_i32_0 = arith.constant 0 : i32
    %c0_i32_1 = arith.constant 0 : i32
    return %c0_i32, %c0_i32_0 : i32, i32
  }
  func.func @transform_4(%arg0: i32, %arg1: i32, %arg2: i32) -> (i32, i32) {
    %c0_i32 = arith.constant 0 : i32
    %c0_i32_0 = arith.constant 0 : i32
    %c0_i32_1 = arith.constant 0 : i32
    return %c0_i32, %c0_i32_0 : i32, i32
  }
  func.func @transform_5(%arg0: i32, %arg1: i32, %arg2: i32) -> (i32, i32) {
    %c0_i32 = arith.constant 0 : i32
    %c0_i32_0 = arith.constant 0 : i32
    %c0_i32_1 = arith.constant 0 : i32
    return %c0_i32, %c0_i32_0 : i32, i32
  }
  func.func @transform_6(%arg0: i32, %arg1: i32, %arg2: i32) -> (i32, i32, i32) {
    %c0_i32 = arith.constant 0 : i32
    %c0_i32_0 = arith.constant 0 : i32
    return %arg0, %arg1, %c0_i32 : i32, i32, i32
  }
}

</mosaic_0001>

<llo_original>
// kernel: tpu_custom_call.1
$region0: #{tpu_custom_call.1}
  #allocation0 [shape = 'u32[]', space=smem, size = 0x4, offset = 0x4, fixed_abs, tag = 'smem constant byte address 0x4 - core index']
  #allocation1 [shape = 'u32[144,128]{1,0:T(1,128)}', space=vmem, size = 0x12000, scoped, tag = 'internal scratch']
  #allocation2 [shape = 'f32[8,128]{1,0:T(8,128)}', space=vmem, size = 0x1000, scoped, tag = 'scratch operand']
  #allocation3 [shape = 'f32[8,1]{1,0:T(8,128)}', space=vmem, size = 0x1000, scoped, tag = 'scratch operand']
  #allocation4 [shape = 'f32[8,1]{1,0:T(8,128)}', space=vmem, size = 0x1000, scoped, tag = 'scratch operand']
  #allocation5 [shape = 'f32[8,128]{1,0:T(8,128)}', space=vmem, size = 0x1000, scoped, tag = 'scratch operand']
  %s0 = inlined_call_operand.hbm [shape: f32[2,8,16], index: 0, kind: input, shape index: {}]
  %s1 = inlined_call_operand.hbm [shape: f32[2,8,16], index: 1, kind: input, shape index: {}]
  %s2 = inlined_call_operand.hbm [shape: f32[16,128], index: 2, kind: input, shape index: {}]
  %s3 = inlined_call_operand.hbm [shape: f32[16,256], index: 3, kind: input, shape index: {}]
  %s4 = inlined_call_operand.vmem [shape: f32[1,128], index: 4, kind: input, shape index: {}]
  %s5 = inlined_call_operand.vmem [shape: f32[1,256], index: 5, kind: input, shape index: {}]
  %s6 = inlined_call_operand.hbm [shape: f32[2,8,128], index: 6, kind: output, shape index: {}]
  %s7 = sld [smem:[#allocation0]]
  $region81: #{tpu_custom_call.1} parent=0
    _
  %s9 = ssub.s32 1, %s7
  %s10 = scalar_select 0, %s9, %s7
  $region1: #{tpu_custom_call.1} parent=0
    #allocation6 [shape = 'u8[8192]{0}', space=vmem, size = 0x2000, scoped, tag = 'input window, operand 0']
    #allocation7 [shape = 's32[2]{0}', space=sflag, size = 0x8, scoped, tag = 'scoped memory for tpu_custom_call.1']
    #allocation8 [shape = 's32[2]{0}', space=sflag, size = 0x8, scoped, tag = 'scoped memory for tpu_custom_call.1']
    #allocation9 [shape = 'u8[8192]{0}', space=vmem, size = 0x2000, scoped, tag = 'input window, operand 1']
    #allocation10 [shape = 's32[2]{0}', space=sflag, size = 0x8, scoped, tag = 'scoped memory for tpu_custom_call.1']
    #allocation11 [shape = 'u8[8192]{0}', space=vmem, size = 0x2000, scoped, tag = 'input window, operand 2, single buffered']
    #allocation12 [shape = 'u8[16384]{0}', space=vmem, size = 0x4000, scoped, tag = 'input window, operand 3, single buffered']
    #allocation13 [shape = 's32[1]{0}', space=sflag, size = 0x4, scoped, tag = 'scoped memory for tpu_custom_call.1']
    #allocation14 [shape = 'u8[8192]{0}', space=vmem, size = 0x2000, scoped, tag = 'output window, operand 0']
    %11 = vsyncpa [#allocation7], 0
    %s12 = scalar_lea.sflag [#allocation7], 1
    %13 = vsyncpa %s12, 0
    %14 = vsyncpa [#allocation10], 0
    %s15 = scalar_lea.sflag [#allocation10], 1
    %16 = vsyncpa %s15, 0
    %17 = vsyncpa [#allocation13], 0
    %18 = vsyncpa [#allocation8], 0
    %s19 = scalar_lea.sflag [#allocation8], 1
    %20 = vsyncpa %s19, 0
    loop: start=0, step=1, limit=4
    $region2: #{tpu_custom_call.1} parent=1 // loop_pre_header
      _
    $region3: #{tpu_custom_call.1} parent=1 // loop_header
      %s22 = sphi 0, %s26
      %p23 = scmp.ge.s32.totalorder %s22, 4
      %s29 = sphi 0, %s48
      %s30 = sphi 0, %s44
      %s31 = sphi 0, %s40
      %s32 = sphi 0, %s29
      %s33 = sphi 0, %s30
      %s34 = sphi 0, %s31
      %s35 = sphi 0, %s32
      %s36 = sphi 0, %s33
      %s37 = sphi 0, %s34
      %s53 = sphi 0, %s55
      %s56 = sphi 0, %s53
      %s57 = sphi 0, %s56
      %s73 = sphi 0, %s57
      %s81 = sphi 0, %s83
      %s84 = sphi 0, %s81
      %s85 = sphi 0, %s84
      %s101 = sphi 0, %s85
      %s105 = sphi 0, %s105
      %s107 = sphi 0, %s105
      %s108 = sphi 0, %s107
      %s122 = sphi 0, %s108
      %s126 = sphi 0, %s126
      %s128 = sphi 0, %s126
      %s129 = sphi 0, %s128
      %s143 = sphi 0, %s129
      %s147 = sphi 0, %s147
      %s149 = sphi 0, %s147
      %s150 = sphi 0, %s149
      %s164 = sphi 0, %s150
      %s168 = sphi 0, %s168
      %s170 = sphi 0, %s168
      %s171 = sphi 0, %s170
      %s185 = sphi 0, %s171
      %s193 = sphi 0, %s195
      %s196 = sphi 0, %s193
      %s197 = sphi 0, %s196
      %s213 = sphi 0, %s197
    $region4: #{tpu_custom_call.1} parent=1 // loop_header_branch
      %25 = sbr.rel (%p23) target = $region8
    $region5: #{tpu_custom_call.1} parent=1 // loop_body
      %s27 = ssub.s32 %s22, 1
      %s28 = ssub.s32 %s22, 2
      %s38 = sadd.s32 1, %s31
      %p39 = scmp.ge.s32.totalorder %s38, 1
      %s40 = scalar_select %p39, 0, %s38
      %s41 = sadd.s32 1, %s30
      %s42 = scalar_select %p39, %s41, %s30
      %p43 = scmp.ge.s32.totalorder %s42, 1
      %s44 = scalar_select %p43, 0, %s42
      %s45 = sadd.s32 1, %s29
      %s46 = scalar_select %p43, %s45, %s29
      %p47 = scmp.ge.s32.totalorder %s46, 2
      %s48 = scalar_select %p47, 0, %s46
      %s49 = ssub.s32 %s29, %s48
      %s50 = ssub.s32 %s30, %s44
      %s51 = sor.u32 %s49, %s50
      %p52 = scmp.eq.s32.totalorder %s51, 0
      %s54 = sadd.s32 %s53, 1
      %s55 = scalar_select %p52, %s53, %s54
      %p58 = pneg %p52
      %p59 = scmp.eq.s32.totalorder %s22, 1
      %p60 = por %p58, %p59
      %p61 = scmp.ne.s32.totalorder %s53, %s56
      %p62 = scmp.eq.s32.totalorder %s22, 0
      %p63 = por %p61, %p62
      %p64 = scmp.ne.s32.totalorder %s53, %s56
      %p65 = scmp.eq.s32.totalorder %s27, 1
      %p66 = por %p64, %p65
      %p67 = scmp.ne.s32.totalorder %s56, %s57
      %p68 = scmp.eq.s32.totalorder %s27, 0
      %p69 = por %p67, %p68
      %p70 = scmp.ne.s32.totalorder %s56, %s57
      %p71 = scmp.eq.s32.totalorder %s28, 1
      %p72 = por %p70, %p71
      %p74 = scmp.ne.s32.totalorder %s57, %s73
      %p75 = scmp.eq.s32.totalorder %s28, 0
      %p76 = por %p74, %p75
      %s77 = ssub.s32 %s29, %s48
      %s78 = ssub.s32 %s31, %s40
      %s79 = sor.u32 %s77, %s78
      %p80 = scmp.eq.s32.totalorder %s79, 0
      %s82 = sadd.s32 %s81, 1
      %s83 = scalar_select %p80, %s81, %s82
      %p86 = pneg %p80
      %p87 = scmp.eq.s32.totalorder %s22, 1
      %p88 = por %p86, %p87
      %p89 = scmp.ne.s32.totalorder %s81, %s84
      %p90 = scmp.eq.s32.totalorder %s22, 0
      %p91 = por %p89, %p90
      %p92 = scmp.ne.s32.totalorder %s81, %s84
      %p93 = scmp.eq.s32.totalorder %s27, 1
      %p94 = por %p92, %p93
      %p95 = scmp.ne.s32.totalorder %s84, %s85
      %p96 = scmp.eq.s32.totalorder %s27, 0
      %p97 = por %p95, %p96
      %p98 = scmp.ne.s32.totalorder %s84, %s85
      %p99 = scmp.eq.s32.totalorder %s28, 1
      %p100 = por %p98, %p99
      %p102 = scmp.ne.s32.totalorder %s85, %s101
      %p103 = scmp.eq.s32.totalorder %s28, 0
      %p104 = por %p102, %p103
      %s106 = sadd.s32 %s105, 1
      %p109 = scmp.eq.s32.totalorder %s22, 1
      %p110 = scmp.ne.s32.totalorder %s105, %s107
      %p111 = scmp.eq.s32.totalorder %s22, 0
      %p112 = por %p110, %p111
      %p113 = scmp.ne.s32.totalorder %s105, %s107
      %p114 = scmp.eq.s32.totalorder %s27, 1
      %p115 = por %p113, %p114
      %p116 = scmp.ne.s32.totalorder %s107, %s108
      %p117 = scmp.eq.s32.totalorder %s27, 0
      %p118 = por %p116, %p117
      %p119 = scmp.ne.s32.totalorder %s107, %s108
      %p120 = scmp.eq.s32.totalorder %s28, 1
      %p121 = por %p119, %p120
      %p123 = scmp.ne.s32.totalorder %s108, %s122
      %p124 = scmp.eq.s32.totalorder %s28, 0
      %p125 = por %p123, %p124
      %s127 = sadd.s32 %s126, 1
      %p130 = scmp.eq.s32.totalorder %s22, 1
      %p131 = scmp.ne.s32.totalorder %s126, %s128
      %p132 = scmp.eq.s32.totalorder %s22, 0
      %p133 = por %p131, %p132
      %p134 = scmp.ne.s32.totalorder %s126, %s128
      %p135 = scmp.eq.s32.totalorder %s27, 1
      %p136 = por %p134, %p135
      %p137 = scmp.ne.s32.totalorder %s128, %s129
      %p138 = scmp.eq.s32.totalorder %s27, 0
      %p139 = por %p137, %p138
      %p140 = scmp.ne.s32.totalorder %s128, %s129
      %p141 = scmp.eq.s32.totalorder %s28, 1
      %p142 = por %p140, %p141
      %p144 = scmp.ne.s32.totalorder %s129, %s143
      %p145 = scmp.eq.s32.totalorder %s28, 0
      %p146 = por %p144, %p145
      %s148 = sadd.s32 %s147, 1
      %p151 = scmp.eq.s32.totalorder %s22, 1
      %p152 = scmp.ne.s32.totalorder %s147, %s149
      %p153 = scmp.eq.s32.totalorder %s22, 0
      %p154 = por %p152, %p153
      %p155 = scmp.ne.s32.totalorder %s147, %s149
      %p156 = scmp.eq.s32.totalorder %s27, 1
      %p157 = por %p155, %p156
      %p158 = scmp.ne.s32.totalorder %s149, %s150
      %p159 = scmp.eq.s32.totalorder %s27, 0
      %p160 = por %p158, %p159
      %p161 = scmp.ne.s32.totalorder %s149, %s150
      %p162 = scmp.eq.s32.totalorder %s28, 1
      %p163 = por %p161, %p162
      %p165 = scmp.ne.s32.totalorder %s150, %s164
      %p166 = scmp.eq.s32.totalorder %s28, 0
      %p167 = por %p165, %p166
      %s169 = sadd.s32 %s168, 1
      %p172 = scmp.eq.s32.totalorder %s22, 1
      %p173 = scmp.ne.s32.totalorder %s168, %s170
      %p174 = scmp.eq.s32.totalorder %s22, 0
      %p175 = por %p173, %p174
      %p176 = scmp.ne.s32.totalorder %s168, %s170
      %p177 = scmp.eq.s32.totalorder %s27, 1
      %p178 = por %p176, %p177
      %p179 = scmp.ne.s32.totalorder %s170, %s171
      %p180 = scmp.eq.s32.totalorder %s27, 0
      %p181 = por %p179, %p180
      %p182 = scmp.ne.s32.totalorder %s170, %s171
      %p183 = scmp.eq.s32.totalorder %s28, 1
      %p184 = por %p182, %p183
      %p186 = scmp.ne.s32.totalorder %s171, %s185
      %p187 = scmp.eq.s32.totalorder %s28, 0
      %p188 = por %p186, %p187
      %s189 = ssub.s32 %s29, %s48
      %s190 = ssub.s32 %s30, %s44
      %s191 = sor.u32 %s189, %s190
      %p192 = scmp.eq.s32.totalorder %s191, 0
      %s194 = sadd.s32 %s193, 1
      %s195 = scalar_select %p192, %s193, %s194
      %p198 = pneg %p192
      %p199 = scmp.eq.s32.totalorder %s22, 1
      %p200 = por %p198, %p199
      %p201 = scmp.ne.s32.totalorder %s193, %s196
      %p202 = scmp.eq.s32.totalorder %s22, 0
      %p203 = por %p201, %p202
      %p204 = scmp.ne.s32.totalorder %s193, %s196
      %p205 = scmp.eq.s32.totalorder %s27, 1
      %p206 = por %p204, %p205
      %p207 = scmp.ne.s32.totalorder %s196, %s197
      %p208 = scmp.eq.s32.totalorder %s27, 0
      %p209 = por %p207, %p208
      %p210 = scmp.ne.s32.totalorder %s196, %s197
      %p211 = scmp.eq.s32.totalorder %s28, 1
      %p212 = por %p210, %p211
      %p214 = scmp.ne.s32.totalorder %s197, %s213
      %p215 = scmp.eq.s32.totalorder %s28, 0
      %p216 = por %p214, %p215
      %p217 = scmp.le.s32.totalorder 1, %s22
      %p218 = scmp.lt.s32.totalorder %s22, 3
      %p219 = pnand %p217, %p218
      %p220 = pneg %p219
      // Predicated region
      $region9: #{tpu_custom_call.1} parent=5 // pred_check
        _
      $region10: #{tpu_custom_call.1} parent=5 // pred_check_branch
        %222 = sbr.rel (%p219) target = $region12
      $region11: #{tpu_custom_call.1} parent=5 // pred_region
        %s223 = ssub.s32 %s22, 1
        // Predicated region
        $region13: #{tpu_custom_call.1} parent=11 // pred_check
          %p224 = pneg %p118
        $region14: #{tpu_custom_call.1} parent=11 // pred_check_branch
          %226 = sbr.rel (%p224) target = $region16
        $region15: #{tpu_custom_call.1} parent=11 // pred_region
          %s228 = ssub.s32 256, 256
          %229 = vsyncadd [#allocation10], %s228
          %s230 = sshll.u32 [#allocation11], 4
          %s231 = int_to_ptr.vmem [resolvable:$true] %s230
          %236 = dma.hbm_to_vmem [thread:$0]  %s2, 256, %s231, [#allocation10], 128, 128, 8
        $region16: #{tpu_custom_call.1} parent=11 // pred_fallthru
          _
        // Predicated region
        $region17: #{tpu_custom_call.1} parent=11 // pred_check
          %p237 = pneg %p139
        $region18: #{tpu_custom_call.1} parent=11 // pred_check_branch
          %239 = sbr.rel (%p237) target = $region20
        $region19: #{tpu_custom_call.1} parent=11 // pred_region
          %s241 = ssub.s32 512, 512
          %242 = vsyncadd [#allocation13], %s241
          %s243 = sshll.u32 [#allocation12], 4
          %s244 = int_to_ptr.vmem [resolvable:$true] %s243
          %249 = dma.hbm_to_vmem [thread:$0]  %s3, 512, %s244, [#allocation13], 256, 256, 16
        $region20: #{tpu_custom_call.1} parent=11 // pred_fallthru
          _
        // Predicated region
        $region21: #{tpu_custom_call.1} parent=11 // pred_check
          %p250 = pneg %p160
        $region22: #{tpu_custom_call.1} parent=11 // pred_check_branch
          %252 = sbr.rel (%p250) target = $region24
        $region23: #{tpu_custom_call.1} parent=11 // pred_region
          _
        $region24: #{tpu_custom_call.1} parent=11 // pred_fallthru
          _
        // Predicated region
        $region25: #{tpu_custom_call.1} parent=11 // pred_check
          %p253 = pneg %p181
        $region26: #{tpu_custom_call.1} parent=11 // pred_check_branch
          %255 = sbr.rel (%p253) target = $region28
        $region27: #{tpu_custom_call.1} parent=11 // pred_region
          _
        $region28: #{tpu_custom_call.1} parent=11 // pred_fallthru
          _
      $region12: #{tpu_custom_call.1} parent=5 // pred_fallthru
        _
      %p256 = scmp.lt.s32.totalorder %s22, 2
      // Predicated region
      $region29: #{tpu_custom_call.1} parent=5 // pred_check
        %p257 = pneg %p256
      $region30: #{tpu_custom_call.1} parent=5 // pred_check_branch
        %259 = sbr.rel (%p257) target = $region32
      $region31: #{tpu_custom_call.1} parent=5 // pred_region
        // Predicated region
        $region33: #{tpu_custom_call.1} parent=31 // pred_check
          %p260 = pneg %p63
        $region34: #{tpu_custom_call.1} parent=31 // pred_check_branch
          %262 = sbr.rel (%p260) target = $region36
        $region35: #{tpu_custom_call.1} parent=31 // pred_region
          %s263 = sand.u32 %s53, 1
          %s264 = scalar_lea.sflag [#allocation7], %s263
          %s265 = sand.u32 %s53, 1
          %s266 = smul.addr %s265, 8
          %s267 = scalar_lea.vmem [#allocation6], %s266
          %s269 = ssub.s32 128, 128
          %270 = vsyncadd %s264, %s269
          %s271 = sadd.s32 %s30, %s29
          %s272 = smul.addr %s271, 128
          %s273 = scalar_lea.hbm %s0, %s272
          %s275 = sshll.u32 %s267, 4
          %s276 = int_to_ptr.vmem [resolvable:$true] %s275
          %278 = dma.hbm_to_vmem [thread:$0]  %s273, 128, %s276, %s264
        $region36: #{tpu_custom_call.1} parent=31 // pred_fallthru
          _
        // Predicated region
        $region37: #{tpu_custom_call.1} parent=31 // pred_check
          %p279 = pneg %p91
        $region38: #{tpu_custom_call.1} parent=31 // pred_check_branch
          %281 = sbr.rel (%p279) target = $region40
        $region39: #{tpu_custom_call.1} parent=31 // pred_region
          %s282 = sand.u32 %s22, 1
          %s283 = scalar_lea.sflag [#allocation10], %s282
          %s284 = sand.u32 %s81, 1
          %s285 = smul.addr %s284, 8
          %s286 = scalar_lea.vmem [#allocation9], %s285
          %s288 = ssub.s32 128, 128
          %289 = vsyncadd %s283, %s288
          %s290 = sadd.s32 %s31, %s29
          %s291 = smul.addr %s290, 128
          %s292 = scalar_lea.hbm %s1, %s291
          %s294 = sshll.u32 %s286, 4
          %s295 = int_to_ptr.vmem [resolvable:$true] %s294
          %297 = dma.hbm_to_vmem [thread:$0]  %s292, 128, %s295, %s283
        $region40: #{tpu_custom_call.1} parent=31 // pred_fallthru
          _
      $region32: #{tpu_custom_call.1} parent=5 // pred_fallthru
        _
      %p298 = scmp.le.s32.totalorder 1, %s22
      %p299 = scmp.lt.s32.totalorder %s22, 3
      %p300 = pnand %p298, %p299
      %p301 = pneg %p300
      // Predicated region
      $region41: #{tpu_custom_call.1} parent=5 // pred_check
        _
      $region42: #{tpu_custom_call.1} parent=5 // pred_check_branch
        %303 = sbr.rel (%p300) target = $region44
      $region43: #{tpu_custom_call.1} parent=5 // pred_region
        %s304 = ssub.s32 %s22, 1
        %s305 = sand.u32 %s56, 1
        %s306 = scalar_lea.sflag [#allocation7], %s305
        %s307 = sand.u32 %s56, 1
        %s308 = smul.addr %s307, 8
        %s309 = scalar_lea.vmem [#allocation6], %s308
        // Predicated region
        $region45: #{tpu_custom_call.1} parent=43 // pred_check
          %p310 = pneg %p69
        $region46: #{tpu_custom_call.1} parent=43 // pred_check_branch
          %312 = sbr.rel (%p310) target = $region48
        $region47: #{tpu_custom_call.1} parent=43 // pred_region
          %313 = dma.done %s306, 128
        $region48: #{tpu_custom_call.1} parent=43 // pred_fallthru
          _
        %s314 = sand.u32 %s27, 1
        %s315 = scalar_lea.sflag [#allocation10], %s314
        %s316 = sand.u32 %s84, 1
        %s317 = smul.addr %s316, 8
        %s318 = scalar_lea.vmem [#allocation9], %s317
        // Predicated region
        $region49: #{tpu_custom_call.1} parent=43 // pred_check
          %p319 = pneg %p97
        $region50: #{tpu_custom_call.1} parent=43 // pred_check_branch
          %321 = sbr.rel (%p319) target = $region52
        $region51: #{tpu_custom_call.1} parent=43 // pred_region
          %322 = dma.done %s315, 128
        $region52: #{tpu_custom_call.1} parent=43 // pred_fallthru
          _
        // Predicated region
        $region53: #{tpu_custom_call.1} parent=43 // pred_check
          %p323 = pneg %p118
        $region54: #{tpu_custom_call.1} parent=43 // pred_check_branch
          %325 = sbr.rel (%p323) target = $region56
        $region55: #{tpu_custom_call.1} parent=43 // pred_region
          %326 = dma.done [#allocation10], 256
        $region56: #{tpu_custom_call.1} parent=43 // pred_fallthru
          _
        // Predicated region
        $region57: #{tpu_custom_call.1} parent=43 // pred_check
          %p327 = pneg %p139
        $region58: #{tpu_custom_call.1} parent=43 // pred_check_branch
          %329 = sbr.rel (%p327) target = $region60
        $region59: #{tpu_custom_call.1} parent=43 // pred_region
          %330 = dma.done [#allocation13], 512
        $region60: #{tpu_custom_call.1} parent=43 // pred_fallthru
          _
        %s331 = sand.u32 %s56, 1
        %s332 = scalar_lea.sflag [#allocation7], %s331
        %s333 = sand.u32 %s56, 1
        %s334 = smul.addr %s333, 8
        %s335 = scalar_lea.vmem [#allocation6], %s334
        %p336 = pneg %p69
        %p337 = pneg %p66
        %s338 = sand.u32 %s27, 1
        %s339 = scalar_lea.sflag [#allocation10], %s338
        %s340 = sand.u32 %s84, 1
        %s341 = smul.addr %s340, 8
        %s342 = scalar_lea.vmem [#allocation9], %s341
        %p343 = pneg %p97
        %p344 = pneg %p94
        %p345 = pneg %p118
        %p346 = pneg %p115
        %p347 = pneg %p139
        %p348 = pneg %p136
        %p349 = pneg %p160
        %p350 = pneg %p157
        %p351 = pneg %p181
        %p352 = pneg %p178
        %p353 = pneg %p209
        %p354 = pneg %p206
        %s355 = sand.u32 %s196, 1
        %s356 = scalar_lea.sflag [#allocation8], %s355
        %s357 = sand.u32 %s196, 1
        %s358 = smul.addr %s357, 8
        %s359 = scalar_lea.vmem [#allocation14], %s358
        %p360 = scmp.eq.s32.totalorder %s34, 0
        // Predicated region
        $region61: #{tpu_custom_call.1} parent=43 // pred_check
          %p361 = pneg %p360
        $region62: #{tpu_custom_call.1} parent=43 // pred_check_branch
          %363 = sbr.rel (%p361) target = $region64
        $region63: #{tpu_custom_call.1} parent=43 // pred_region
          %v364 = vld [vmem:[%s309] sm:$0xff]
          %v365 = vld [vmem:[#allocation11] sm:$0xff]
          %v366 = vld [vmem:[#allocation11 + $0x8] sm:$0xff]
          %v367 = vld [vmem:[%s4] sm:$0x1]
          %v369 = vlaneseq
          %v370 = vshrl.u32 %v369, 7
          %v371 = vsub.s32 0, %v370
          %v372 = vrot.slane %v367, %v371
          %vm374 = vcmask 130048
          %v376 = vsel %vm374, %v364, 0
          %378 = vmatprep.subr.mxu0 0.0
          %379 = vmatpush1.msra.mxu0 %v365
          %380 = vmatprep.subr.mxu0 0.0
          %381 = vmatpush1.msra.mxu0 %v366
          %382 = vmatprep.subr.mxu0 0.0
          %383 = vmatpush1.msra.mxu0 0.0
          %384 = vmatprep.subr.mxu0 0.0
          %385 = vmatpush1.msra.mxu0 0.0
          %386 = vmatprep.subr.mxu0 0.0
          %387 = vmatpush1.msra.mxu0 0.0
          %388 = vmatprep.subr.mxu0 0.0
          %389 = vmatpush1.msra.mxu0 0.0
          %390 = vmatprep.subr.mxu0 0.0
          %391 = vmatpush1.msra.mxu0 0.0
          %392 = vmatprep.subr.mxu0 0.0
          %393 = vmatpush1.msra.mxu0 0.0
          %394 = vmatprep.subr.mxu0 0.0
          %395 = vmatpush1.msra.mxu0 0.0
          %396 = vmatprep.subr.mxu0 0.0
          %397 = vmatpush1.msra.mxu0 0.0
          %398 = vmatprep.subr.mxu0 0.0
          %399 = vmatpush1.msra.mxu0 0.0
          %400 = vmatprep.subr.mxu0 0.0
          %401 = vmatpush1.msra.mxu0 0.0
          %402 = vmatprep.subr.mxu0 0.0
          %403 = vmatpush1.msra.mxu0 0.0
          %404 = vmatprep.subr.mxu0 0.0
          %405 = vmatpush1.msra.mxu0 0.0
          %406 = vmatprep.subr.mxu0 0.0
          %407 = vmatpush1.msra.mxu0 0.0
          %408 = vmatprep.subr.mxu0 0.0
          %409 = vmatpush1.msra.mxu0 0.0
          %410 = vmatprep.subr.mxu0 0.0
          %411 = vmatpush1.msra.mxu0 0.0
          %412 = vmatprep.subr.mxu0 0.0
          %413 = vmatpush1.msra.mxu0 0.0
          %414 = vmatprep.subr.mxu0 0.0
          %415 = vmatpush1.msra.mxu0 0.0
          %416 = vmatprep.subr.mxu0 0.0
          %417 = vmatpush1.msra.mxu0 0.0
          %418 = vmatprep.subr.mxu0 0.0
          %419 = vmatpush1.msra.mxu0 0.0
          %420 = vmatprep.subr.mxu0 0.0
          %421 = vmatpush1.msra.mxu0 0.0
          %422 = vmatprep.subr.mxu0 0.0
          %423 = vmatpush1.msra.mxu0 0.0
          %424 = vmatprep.subr.mxu0 0.0
          %425 = vmatpush1.msra.mxu0 0.0
          %426 = vmatprep.subr.mxu0 0.0
          %427 = vmatpush1.msra.mxu0 0.0
          %428 = vmatprep.subr.mxu0 0.0
          %429 = vmatpush1.msra.mxu0 0.0
          %430 = vmatprep.subr.mxu0 0.0
          %431 = vmatpush1.msra.mxu0 0.0
          %432 = vmatprep.subr.mxu0 0.0
          %433 = vmatpush1.msra.mxu0 0.0
          %434 = vmatprep.subr.mxu0 0.0
          %435 = vmatpush1.msra.mxu0 0.0
          %436 = vmatprep.subr.mxu0 0.0
          %437 = vmatpush1.msra.mxu0 0.0
          %438 = vmatprep.subr.mxu0 0.0
          %439 = vmatpush1.msra.mxu0 0.0
          %440 = vmatprep.subr.mxu0 0.0
          %441 = vmatpush1.msra.mxu0 0.0
          %442 = vmatprep.mubr.f32.mxu0 0.0
          %443 = vmatmul.mubr.f32.gmra.mrb[0].mxu0 %v376
          %v444 = vpop.f32.mrb[0].mxu0
          %v445 = vadd.f32 %v372, %v444
          %v446 = vpop.f32.mrb[0].mxu0
          %447 = vdwg.mxu0
          %448 = vst [vmem:[#allocation2] sm:$0xff] %v445
          %vm449 = vcmask 7168
          %450 = vst.msk [vmem:[#allocation3] sm:$0xff] %vm449, -inf
          %451 = vst.msk [vmem:[#allocation4] sm:$0xff] %vm449, 0.0
          %452 = vst [vmem:[#allocation5] sm:$0xff] 0.0
        $region64: #{tpu_custom_call.1} parent=43 // pred_fallthru
          _
        %v453 = vld [vmem:[%s318] sm:$0xff]
        %v454 = vld [vmem:[#allocation12] sm:$0xff]
        %v455 = vld [vmem:[#allocation12 + $0x8] sm:$0xff]
        %v456 = vld [vmem:[#allocation12 + $0x10] sm:$0xff]
        %v457 = vld [vmem:[#allocation12 + $0x18] sm:$0xff]
        %v458 = vld [vmem:[%s5] sm:$0x3]
        %v460 = vlaneseq
        %v461 = vshrl.u32 %v460, 7
        %v462 = vsub.s32 0, %v461
        %v463 = vrot.slane %v458, %v462
        %v464 = vlaneseq
        %v465 = vshrl.u32 %v464, 7
        %v466 = vsub.s32 1, %v465
        %v467 = vrot.slane %v458, %v466
        %vm470 = vcmask 130048
        %v472 = vsel %vm470, %v453, 0
        %474 = vmatprep.subr.mxu0 %v455
        %475 = vmatpush1.msra.mxu0 %v454
        %476 = vmatprep.subr.mxu0 %v457
        %477 = vmatpush1.msra.mxu0 %v456
        %478 = vmatprep.subr.mxu0 0.0
        %479 = vmatpush1.msra.mxu0 0.0
        %480 = vmatprep.subr.mxu0 0.0
        %481 = vmatpush1.msra.mxu0 0.0
        %482 = vmatprep.subr.mxu0 0.0
        %483 = vmatpush1.msra.mxu0 0.0
        %484 = vmatprep.subr.mxu0 0.0
        %485 = vmatpush1.msra.mxu0 0.0
        %486 = vmatprep.subr.mxu0 0.0
        %487 = vmatpush1.msra.mxu0 0.0
        %488 = vmatprep.subr.mxu0 0.0
        %489 = vmatpush1.msra.mxu0 0.0
        %490 = vmatprep.subr.mxu0 0.0
        %491 = vmatpush1.msra.mxu0 0.0
        %492 = vmatprep.subr.mxu0 0.0
        %493 = vmatpush1.msra.mxu0 0.0
        %494 = vmatprep.subr.mxu0 0.0
        %495 = vmatpush1.msra.mxu0 0.0
        %496 = vmatprep.subr.mxu0 0.0
        %497 = vmatpush1.msra.mxu0 0.0
        %498 = vmatprep.subr.mxu0 0.0
        %499 = vmatpush1.msra.mxu0 0.0
        %500 = vmatprep.subr.mxu0 0.0
        %501 = vmatpush1.msra.mxu0 0.0
        %502 = vmatprep.subr.mxu0 0.0
        %503 = vmatpush1.msra.mxu0 0.0
        %504 = vmatprep.subr.mxu0 0.0
        %505 = vmatpush1.msra.mxu0 0.0
        %506 = vmatprep.subr.mxu0 0.0
        %507 = vmatpush1.msra.mxu0 0.0
        %508 = vmatprep.subr.mxu0 0.0
        %509 = vmatpush1.msra.mxu0 0.0
        %510 = vmatprep.subr.mxu0 0.0
        %511 = vmatpush1.msra.mxu0 0.0
        %512 = vmatprep.subr.mxu0 0.0
        %513 = vmatpush1.msra.mxu0 0.0
        %514 = vmatprep.subr.mxu0 0.0
        %515 = vmatpush1.msra.mxu0 0.0
        %516 = vmatprep.subr.mxu0 0.0
        %517 = vmatpush1.msra.mxu0 0.0
        %518 = vmatprep.subr.mxu0 0.0
        %519 = vmatpush1.msra.mxu0 0.0
        %520 = vmatprep.subr.mxu0 0.0
        %521 = vmatpush1.msra.mxu0 0.0
        %522 = vmatprep.subr.mxu0 0.0
        %523 = vmatpush1.msra.mxu0 0.0
        %524 = vmatprep.subr.mxu0 0.0
        %525 = vmatpush1.msra.mxu0 0.0
        %526 = vmatprep.subr.mxu0 0.0
        %527 = vmatpush1.msra.mxu0 0.0
        %528 = vmatprep.subr.mxu0 0.0
        %529 = vmatpush1.msra.mxu0 0.0
        %530 = vmatprep.subr.mxu0 0.0
        %531 = vmatpush1.msra.mxu0 0.0
        %532 = vmatprep.subr.mxu0 0.0
        %533 = vmatpush1.msra.mxu0 0.0
        %534 = vmatprep.subr.mxu0 0.0
        %535 = vmatpush1.msra.mxu0 0.0
        %536 = vmatprep.subr.mxu0 0.0
        %537 = vmatpush1.msra.mxu0 0.0
        %538 = vmatprep.mubr.f32.mxu0 0.0
        %539 = vmatmul.mubr.f32.gmra.mrb[0].mxu0 %v472
        %v540 = vpop.f32.mrb[0].mxu0
        %v541 = vadd.f32 %v463, %v540
        %v542 = vpop.f32.mrb[0].mxu0
        %v543 = vadd.f32 %v467, %v542
        %544 = vdwg.mxu0
        %v545 = vld [vmem:[#allocation2] sm:$0xff]
        %546 = vmatprep.subr.mxu0 0.0
        %547 = vmatpush1.xpose.msra.mxu0 %v541
        %548 = vmatprep.subr.mxu0 0.0
        %549 = vmatpush1.xpose.msra.mxu0 0.0
        %550 = vmatprep.subr.mxu0 0.0
        %551 = vmatpush1.xpose.msra.mxu0 0.0
        %552 = vmatprep.subr.mxu0 0.0
        %553 = vmatpush1.xpose.msra.mxu0 0.0
        %554 = vmatprep.subr.mxu0 0.0
        %555 = vmatpush1.xpose.msra.mxu0 0.0
        %556 = vmatprep.subr.mxu0 0.0
        %557 = vmatpush1.xpose.msra.mxu0 0.0
        %558 = vmatprep.subr.mxu0 0.0
        %559 = vmatpush1.xpose.msra.mxu0 0.0
        %560 = vmatprep.subr.mxu0 0.0
        %561 = vmatpush1.xpose.msra.mxu0 0.0
        %562 = vmatprep.subr.mxu0 0.0
        %563 = vmatpush1.xpose.msra.mxu0 0.0
        %564 = vmatprep.subr.mxu0 0.0
        %565 = vmatpush1.xpose.msra.mxu0 0.0
        %566 = vmatprep.subr.mxu0 0.0
        %567 = vmatpush1.xpose.msra.mxu0 0.0
        %568 = vmatprep.subr.mxu0 0.0
        %569 = vmatpush1.xpose.msra.mxu0 0.0
        %570 = vmatprep.subr.mxu0 0.0
        %571 = vmatpush1.xpose.msra.mxu0 0.0
        %572 = vmatprep.subr.mxu0 0.0
        %573 = vmatpush1.xpose.msra.mxu0 0.0
        %574 = vmatprep.subr.mxu0 0.0
        %575 = vmatpush1.xpose.msra.mxu0 0.0
        %576 = vmatprep.subr.mxu0 0.0
        %577 = vmatpush1.xpose.msra.mxu0 0.0
        %578 = vmatprep.subr.mxu0 0.0
        %579 = vmatpush1.xpose.msra.mxu0 0.0
        %580 = vmatprep.subr.mxu0 0.0
        %581 = vmatpush1.xpose.msra.mxu0 0.0
        %582 = vmatprep.subr.mxu0 0.0
        %583 = vmatpush1.xpose.msra.mxu0 0.0
        %584 = vmatprep.subr.mxu0 0.0
        %585 = vmatpush1.xpose.msra.mxu0 0.0
        %586 = vmatprep.subr.mxu0 0.0
        %587 = vmatpush1.xpose.msra.mxu0 0.0
        %588 = vmatprep.subr.mxu0 0.0
        %589 = vmatpush1.xpose.msra.mxu0 0.0
        %590 = vmatprep.subr.mxu0 0.0
        %591 = vmatpush1.xpose.msra.mxu0 0.0
        %592 = vmatprep.subr.mxu0 0.0
        %593 = vmatpush1.xpose.msra.mxu0 0.0
        %594 = vmatprep.subr.mxu0 0.0
        %595 = vmatpush1.xpose.msra.mxu0 0.0
        %596 = vmatprep.subr.mxu0 0.0
        %597 = vmatpush1.xpose.msra.mxu0 0.0
        %598 = vmatprep.subr.mxu0 0.0
        %599 = vmatpush1.xpose.msra.mxu0 0.0
        %600 = vmatprep.subr.mxu0 0.0
        %601 = vmatpush1.xpose.msra.mxu0 0.0
        %602 = vmatprep.subr.mxu0 0.0
        %603 = vmatpush1.xpose.msra.mxu0 0.0
        %604 = vmatprep.subr.mxu0 0.0
        %605 = vmatpush1.xpose.msra.mxu0 0.0
        %606 = vmatprep.subr.mxu0 0.0
        %607 = vmatpush1.xpose.msra.mxu0 0.0
        %608 = vmatprep.subr.mxu0 0.0
        %609 = vmatpush1.xpose.msra.mxu0 0.0
        %610 = vmatprep.mubr.f32.mxu0 0.0
        %611 = vmatmul.mubr.f32.gmra.mrb[0].mxu0 %v545
        %v612 = vpop.f32.mrb[0].mxu0
        %v613 = vadd.f32 0.0, %v612
        %v614 = vpop.f32.mrb[0].mxu0
        %615 = vdwg.mxu0
        %v616 = vld [vmem:[#allocation3] sm:$0xff]
        %vm617 = vcmask 64512
        %v618 = vsel %vm617, %v613, -inf
        %619 = vmax.xlane.f32.xlu0 %v618
        %v620 = vpop.xlane.xlu0 %619
        %v621 = vmax.f32 %v616, %v620
        %v622 = vsub.f32 %v616, %v621
        %v623 = vmul.f32 %v622, 1.442695
        %v624 = vpow.pop %v623
        %626 = vset.pattern.permute.xlu0 0
        %627 = vperm.xlu0 %626, %v621
        %v628 = vpop.permute.xlu0 %627
        %v630 = vsub.f32 %v613, %v628
        %v631 = vmul.f32 %v630, 1.442695
        %v632 = vpow.pop %v631
        %v633 = vld [vmem:[#allocation4] sm:$0xff]
        %v634 = vmul.f32 %v624, %v633
        %v635 = vsel %vm617, %v632, 0.0
        %636 = vadd.xlane.f32.xlu0 %v635
        %v637 = vpop.xlane.xlu0 %636
        %v638 = vadd.f32 %v634, %v637
        %vm639 = vcmask 7168
        %640 = vst.msk [vmem:[#allocation4] sm:$0xff] %vm639, %v638
        %v641 = vld [vmem:[#allocation5] sm:$0xff]
        %643 = vset.pattern.permute.xlu0 0
        %644 = vperm.xlu0 %643, %v624
        %v645 = vpop.permute.xlu0 %644
        %v647 = vmul.f32 %v645, %v641
        %v649 = vsel %vm617, %v632, 0
        %651 = vmatprep.subr.mxu0 0.0
        %652 = vmatpush1.msra.mxu0 %v543
        %653 = vmatprep.subr.mxu0 0.0
        %654 = vmatpush1.msra.mxu0 0.0
        %655 = vmatprep.subr.mxu0 0.0
        %656 = vmatpush1.msra.mxu0 0.0
        %657 = vmatprep.subr.mxu0 0.0
        %658 = vmatpush1.msra.mxu0 0.0
        %659 = vmatprep.subr.mxu0 0.0
        %660 = vmatpush1.msra.mxu0 0.0
        %661 = vmatprep.subr.mxu0 0.0
        %662 = vmatpush1.msra.mxu0 0.0
        %663 = vmatprep.subr.mxu0 0.0
        %664 = vmatpush1.msra.mxu0 0.0
        %665 = vmatprep.subr.mxu0 0.0
        %666 = vmatpush1.msra.mxu0 0.0
        %667 = vmatprep.subr.mxu0 0.0
        %668 = vmatpush1.msra.mxu0 0.0
        %669 = vmatprep.subr.mxu0 0.0
        %670 = vmatpush1.msra.mxu0 0.0
        %671 = vmatprep.subr.mxu0 0.0
        %672 = vmatpush1.msra.mxu0 0.0
        %673 = vmatprep.subr.mxu0 0.0
        %674 = vmatpush1.msra.mxu0 0.0
        %675 = vmatprep.subr.mxu0 0.0
        %676 = vmatpush1.msra.mxu0 0.0
        %677 = vmatprep.subr.mxu0 0.0
        %678 = vmatpush1.msra.mxu0 0.0
        %679 = vmatprep.subr.mxu0 0.0
        %680 = vmatpush1.msra.mxu0 0.0
        %681 = vmatprep.subr.mxu0 0.0
        %682 = vmatpush1.msra.mxu0 0.0
        %683 = vmatprep.subr.mxu0 0.0
        %684 = vmatpush1.msra.mxu0 0.0
        %685 = vmatprep.subr.mxu0 0.0
        %686 = vmatpush1.msra.mxu0 0.0
        %687 = vmatprep.subr.mxu0 0.0
        %688 = vmatpush1.msra.mxu0 0.0
        %689 = vmatprep.subr.mxu0 0.0
        %690 = vmatpush1.msra.mxu0 0.0
        %691 = vmatprep.subr.mxu0 0.0
        %692 = vmatpush1.msra.mxu0 0.0
        %693 = vmatprep.subr.mxu0 0.0
        %694 = vmatpush1.msra.mxu0 0.0
        %695 = vmatprep.subr.mxu0 0.0
        %696 = vmatpush1.msra.mxu0 0.0
        %697 = vmatprep.subr.mxu0 0.0
        %698 = vmatpush1.msra.mxu0 0.0
        %699 = vmatprep.subr.mxu0 0.0
        %700 = vmatpush1.msra.mxu0 0.0
        %701 = vmatprep.subr.mxu0 0.0
        %702 = vmatpush1.msra.mxu0 0.0
        %703 = vmatprep.subr.mxu0 0.0
        %704 = vmatpush1.msra.mxu0 0.0
        %705 = vmatprep.subr.mxu0 0.0
        %706 = vmatpush1.msra.mxu0 0.0
        %707 = vmatprep.subr.mxu0 0.0
        %708 = vmatpush1.msra.mxu0 0.0
        %709 = vmatprep.subr.mxu0 0.0
        %710 = vmatpush1.msra.mxu0 0.0
        %711 = vmatprep.subr.mxu0 0.0
        %712 = vmatpush1.msra.mxu0 0.0
        %713 = vmatprep.subr.mxu0 0.0
        %714 = vmatpush1.msra.mxu0 0.0
        %715 = vmatprep.mubr.f32.mxu0 0.0
        %716 = vmatmul.mubr.f32.gmra.mrb[0].mxu0 %v649
        %v717 = vpop.f32.mrb[0].mxu0
        %v718 = vadd.f32 0.0, %v717
        %v719 = vpop.f32.mrb[0].mxu0
        %720 = vdwg.mxu0
        %v721 = vadd.f32 %v647, %v718
        %722 = vst [vmem:[#allocation5] sm:$0xff] %v721
        %723 = vst.msk [vmem:[#allocation3] sm:$0xff] %vm639, %v621
        // Predicated region
        $region65: #{tpu_custom_call.1} parent=43 // pred_check
          %p724 = pneg %p360
        $region66: #{tpu_custom_call.1} parent=43 // pred_check_branch
          %726 = sbr.rel (%p724) target = $region68
        $region67: #{tpu_custom_call.1} parent=43 // pred_region
          %v727 = vld [vmem:[#allocation4] sm:$0xff]
          %v728 = vrcp.pop %v727
          %v729 = vld [vmem:[#allocation5] sm:$0xff]
          %731 = vset.pattern.permute.xlu0 0
          %732 = vperm.xlu0 %731, %v728
          %v733 = vpop.permute.xlu0 %732
          %v735 = vmul.f32 %v729, %v733
          %736 = vst [vmem:[%s359] sm:$0xff] %v735
        $region68: #{tpu_custom_call.1} parent=43 // pred_fallthru
          _
        %s737 = sand.u32 %s196, 1
        %s738 = scalar_lea.sflag [#allocation8], %s737
        %s739 = sand.u32 %s196, 1
        %s740 = smul.addr %s739, 8
        %s741 = scalar_lea.vmem [#allocation14], %s740
        // Predicated region
        $region69: #{tpu_custom_call.1} parent=43 // pred_check
          %p742 = pneg %p206
        $region70: #{tpu_custom_call.1} parent=43 // pred_check_branch
          %744 = sbr.rel (%p742) target = $region72
        $region71: #{tpu_custom_call.1} parent=43 // pred_region
          %s746 = ssub.s32 128, 128
          %747 = vsyncadd %s738, %s746
          %s748 = sadd.s32 %s33, %s32
          %s749 = smul.addr %s748, 128
          %s750 = scalar_lea.hbm %s6, %s749
          %s752 = sshll.u32 %s741, 4
          %s753 = int_to_ptr.vmem [resolvable:$true] %s752
          %755 = dma.vmem_to_hbm [thread:$0]  %s753, 128, %s750, %s738
        $region72: #{tpu_custom_call.1} parent=43 // pred_fallthru
          _
      $region44: #{tpu_custom_call.1} parent=5 // pred_fallthru
        _
      %p756 = scmp.le.s32.totalorder 2, %s22
      // Predicated region
      $region73: #{tpu_custom_call.1} parent=5 // pred_check
        %p757 = pneg %p756
      $region74: #{tpu_custom_call.1} parent=5 // pred_check_branch
        %759 = sbr.rel (%p757) target = $region76
      $region75: #{tpu_custom_call.1} parent=5 // pred_region
        %s760 = ssub.s32 %s22, 2
        // Predicated region
        $region77: #{tpu_custom_call.1} parent=75 // pred_check
          %p761 = pneg %p212
        $region78: #{tpu_custom_call.1} parent=75 // pred_check_branch
          %763 = sbr.rel (%p761) target = $region80
        $region79: #{tpu_custom_call.1} parent=75 // pred_region
          %s764 = sand.u32 %s197, 1
          %s765 = scalar_lea.sflag [#allocation8], %s764
          %s766 = sand.u32 %s197, 1
          %s767 = smul.addr %s766, 8
          %s768 = scalar_lea.vmem [#allocation14], %s767
          %769 = dma.done %s765, 128
        $region80: #{tpu_custom_call.1} parent=75 // pred_fallthru
          _
      $region76: #{tpu_custom_call.1} parent=5 // pred_fallthru
        _
    $region6: #{tpu_custom_call.1} parent=1 // loop_footer
      %s26 = sadd.s32 1, %s22
    $region7: #{tpu_custom_call.1} parent=1 // loop_footer_branch
      %21 = sbr.rel target = $region3
    $region8: #{tpu_custom_call.1} parent=1 // loop_exit
      _
    %770 = vsyncpa [#allocation7], 1
    %s771 = scalar_lea.sflag [#allocation7], 1
    %772 = vsyncpa %s771, 1
    %773 = vsyncpa [#allocation10], 1
    %s774 = scalar_lea.sflag [#allocation10], 1
    %775 = vsyncpa %s774, 1
    %776 = vsyncpa [#allocation13], 1
    %777 = vsyncpa [#allocation8], 1
    %s778 = scalar_lea.sflag [#allocation8], 1
    %779 = vsyncpa %s778, 1

</llo_original>
